<compile_context>
chip_gen: v6e
topology: v6e:2x2x1
jax: 0.10.0
libtpu: 0.0.40
codegen_flags: <defaults>
</compile_context>

<pallas_src>
import jax
import jax.numpy as jnp
from jax import lax
from jax.experimental import pallas as pl
from jax.experimental.pallas import tpu as pltpu


def _batch_hard_triplet_kernel(margin):
    def kernel(x_ref, t_col_ref, t_row_ref, out_ref):
        x = x_ref[...].astype(jnp.float32)                      # (B, D)
        B = x.shape[0]

        # Pairwise squared Euclidean distances via the MXU:
        #   ||xi - xj||^2 = ||xi||^2 + ||xj||^2 - 2 <xi, xj>
        sq = jnp.sum(x * x, axis=-1, keepdims=True)             # (B, 1)
        gram = lax.dot_general(                                  # (B, B) = x @ x.T
            x, x,
            dimension_numbers=(((1,), (1,)), ((), ())),
            preferred_element_type=jnp.float32,
        )
        d2 = jnp.maximum(sq + jnp.transpose(sq) - 2.0 * gram, 0.0)

        # Label masks: pure broadcast compare of pre-shaped labels.
        labels_equal = t_col_ref[...] == t_row_ref[...]          # (B, B) bool

        # Diagonal exclusion for the positive max (kept for robustness: the
        # Gram diagonal is only ~0 up to MXU-vs-VPU accumulation residuals).
        row_i = lax.broadcasted_iota(jnp.int32, (B, B), 0)
        col_i = lax.broadcasted_iota(jnp.int32, (B, B), 1)
        pos_mask = jnp.logical_and(labels_equal, row_i != col_i)

        # Hardest positive (squared): row max over same-label, off-diagonal
        # entries; 0-fill elsewhere (same winner as masking sqrt'd distances,
        # since sqrt is monotone and d2 >= 0).
        hp_d2 = jnp.max(jnp.where(pos_mask, d2, 0.0), axis=1, keepdims=True)

        # Hardest negative (squared): push same-label entries up to the row
        # max, then take the row min.  Numerically identical to PyTorch's
        # "dist + max_dist * (1 - neg_mask)" followed by min, including rows
        # with no negatives (result = row max).
        row_max_d2 = jnp.max(d2, axis=1, keepdims=True)
        hn_d2 = jnp.min(jnp.where(labels_equal, row_max_d2, d2),
                        axis=1, keepdims=True)

        # sqrt only on the (B, 1) winners.
        loss = jnp.maximum(jnp.sqrt(hp_d2) - jnp.sqrt(hn_d2) + margin, 0.0)
        out_ref[0, 0] = jnp.mean(loss)

    return kernel


def batch_hard_triplet_loss(x, target, margin=1.0):
    """x: (B, D) float embeddings; target: (B,) int labels. Returns scalar f32."""
    B, _ = x.shape
    t_col = target.astype(jnp.int32).reshape(B, 1)
    t_row = target.astype(jnp.int32).reshape(1, B)

    out = pl.pallas_call(
        _batch_hard_triplet_kernel(float(margin)),
        out_shape=jax.ShapeDtypeStruct((1, 1), jnp.float32),
        in_specs=[
            pl.BlockSpec(memory_space=pltpu.VMEM),   # x     (B, D)
            pl.BlockSpec(memory_space=pltpu.VMEM),   # t_col (B, 1)
            pl.BlockSpec(memory_space=pltpu.VMEM),   # t_row (1, B)
        ],
        out_specs=pl.BlockSpec(memory_space=pltpu.SMEM),
    )(x, t_col, t_row)
    return out[0, 0]


def _reference(x, target, margin=1.0):
    # Pure-JAX mirror of the PyTorch forward.  torch.cdist at these sizes uses
    # exact pairwise differences (diagonal exactly 0), so do the same here.
    diff = x[:, None, :] - x[None, :, :]
    dist = jnp.sqrt(jnp.sum(diff * diff, axis=-1))
    eq = target[:, None] == target[None, :]
    mask_pos = jnp.logical_and(eq, ~jnp.eye(x.shape[0], dtype=bool)).astype(jnp.float32)
    mask_neg = (~eq).astype(jnp.float32)
    hp = jnp.max(mask_pos * dist, axis=1, keepdims=True)
    max_neg = jnp.max(dist, axis=1, keepdims=True)
    hn = jnp.min(dist + max_neg * (1.0 - mask_neg), axis=1, keepdims=True)
    return jnp.mean(jnp.maximum(hp - hn + margin, 0.0))


if __name__ == "__main__":
    key = jax.random.PRNGKey(0)
    kx, kt = jax.random.split(key)
    B, D = 8, 32
    x = jax.random.normal(kx, (B, D), dtype=jnp.float32)
    target = jax.random.randint(kt, (B,), 0, 3, dtype=jnp.int32)

    loss = jax.block_until_ready(batch_hard_triplet_loss(x, target, margin=1.0))
    ref = _reference(x, target, margin=1.0)
    assert jnp.allclose(loss, ref, atol=1e-4, rtol=1e-4), (loss, ref)

    # Degenerate batch (all labels equal): hardest positive == hardest negative
    # == per-row max distance, so loss == margin for both kernel and reference.
    target_same = jnp.zeros((B,), dtype=jnp.int32)
    loss2 = jax.block_until_ready(batch_hard_triplet_loss(x, target_same, margin=1.0))
    ref2 = _reference(x, target_same, margin=1.0)
    assert jnp.allclose(loss2, ref2, atol=1e-4, rtol=1e-4), (loss2, ref2)

    print("KERNEL_OK")
</pallas_src>

<mosaic_0001>
module attributes {stable_mosaic.version = 11 : i64} {
  func.func @kernel(%arg0: memref<8x32xf32, #tpu.memory_space<vmem>>, %arg1: memref<8x1xi32, #tpu.memory_space<vmem>>, %arg2: memref<1x8xi32, #tpu.memory_space<vmem>>, %arg3: memref<1x1xf32, #tpu.memory_space<smem>>) attributes {dimension_semantics = [], scalar_prefetch = 0 : i64, scratch_operands = 0 : i64, tpu.core_type = #tpu.core_type<tc>} {
    %c0 = arith.constant 0 : index
    %c0_0 = arith.constant 0 : index
    %0 = vector.load %arg0[%c0, %c0_0] : memref<8x32xf32, #tpu.memory_space<vmem>>, vector<8x32xf32>
    %1 = arith.mulf %0, %0 : vector<8x32xf32>
    %cst = arith.constant dense<0.000000e+00> : vector<8xf32>
    %2 = vector.multi_reduction <add>, %1, %cst [1] : vector<8x32xf32> to vector<8xf32>
    %3 = vector.shape_cast %2 : vector<8xf32> to vector<8x1xf32>
    %cst_1 = arith.constant dense<0.000000e+00> : vector<8x8xf32>
    %4 = tpu.matmul %0, %0, %cst_1 {dimension_numbers = #tpu.dot_dimension_numbers<[1], [1], [0], [0], [0, 0, 1, 0], [], []>} : vector<8x32xf32>, vector<8x32xf32>, vector<8x8xf32> -> vector<8x8xf32>
    %5 = tpu.transpose %3, [1, 0] : vector<8x1xf32> -> vector<1x8xf32>
    %6 = vector.broadcast %3 : vector<8x1xf32> to vector<8x8xf32>
    %7 = vector.broadcast %5 : vector<1x8xf32> to vector<8x8xf32>
    %8 = arith.addf %6, %7 : vector<8x8xf32>
    %cst_2 = arith.constant 2.000000e+00 : f32
    %9 = vector.broadcast %cst_2 : f32 to vector<8x8xf32>
    %10 = arith.mulf %9, %4 : vector<8x8xf32>
    %11 = arith.subf %8, %10 : vector<8x8xf32>
    %cst_3 = arith.constant 0.000000e+00 : f32
    %12 = vector.broadcast %cst_3 : f32 to vector<8x8xf32>
    %13 = arith.maximumf %11, %12 : vector<8x8xf32>
    %c0_4 = arith.constant 0 : index
    %c0_5 = arith.constant 0 : index
    %14 = vector.load %arg1[%c0_4, %c0_5] : memref<8x1xi32, #tpu.memory_space<vmem>>, vector<8x1xi32>
    %c0_6 = arith.constant 0 : index
    %c0_7 = arith.constant 0 : index
    %15 = vector.load %arg2[%c0_6, %c0_7] : memref<1x8xi32, #tpu.memory_space<vmem>>, vector<1x8xi32>
    %16 = vector.broadcast %14 : vector<8x1xi32> to vector<8x8xi32>
    %17 = vector.broadcast %15 : vector<1x8xi32> to vector<8x8xi32>
    %18 = arith.cmpi eq, %16, %17 : vector<8x8xi32>
    %19 = tpu.iota {dimensions = array<i32: 0>} : vector<8x8xi32>
    %20 = tpu.iota {dimensions = array<i32: 1>} : vector<8x8xi32>
    %21 = arith.cmpi ne, %19, %20 : vector<8x8xi32>
    %22 = arith.andi %18, %21 : vector<8x8xi1>
    %cst_8 = arith.constant 0.000000e+00 : f32
    %23 = vector.broadcast %cst_8 : f32 to vector<8x8xf32>
    %24 = arith.select %22, %13, %23 : vector<8x8xi1>, vector<8x8xf32>
    %cst_9 = arith.constant dense<0xFF800000> : vector<8xf32>
    %25 = vector.multi_reduction <maximumf>, %24, %cst_9 [1] : vector<8x8xf32> to vector<8xf32>
    %26 = vector.shape_cast %25 : vector<8xf32> to vector<8x1xf32>
    %cst_10 = arith.constant dense<0xFF800000> : vector<8xf32>
    %27 = vector.multi_reduction <maximumf>, %13, %cst_10 [1] : vector<8x8xf32> to vector<8xf32>
    %28 = vector.shape_cast %27 : vector<8xf32> to vector<8x1xf32>
    %29 = vector.shape_cast %28 : vector<8x1xf32> to vector<8x1xf32>
    %30 = vector.broadcast %29 : vector<8x1xf32> to vector<8x8xf32>
    %31 = arith.select %18, %30, %13 : vector<8x8xi1>, vector<8x8xf32>
    %cst_11 = arith.constant dense<0x7F800000> : vector<8xf32>
    %32 = vector.multi_reduction <minimumf>, %31, %cst_11 [1] : vector<8x8xf32> to vector<8xf32>
    %33 = vector.shape_cast %32 : vector<8xf32> to vector<8x1xf32>
    %34 = math.sqrt %26 : vector<8x1xf32>
    %35 = math.sqrt %33 : vector<8x1xf32>
    %36 = arith.subf %34, %35 : vector<8x1xf32>
    %cst_12 = arith.constant 1.000000e+00 : f32
    %37 = vector.broadcast %cst_12 : f32 to vector<8x1xf32>
    %38 = arith.addf %36, %37 : vector<8x1xf32>
    %cst_13 = arith.constant 0.000000e+00 : f32
    %39 = vector.broadcast %cst_13 : f32 to vector<8x1xf32>
    %40 = arith.maximumf %38, %39 : vector<8x1xf32>
    %41 = vector.shape_cast %40 : vector<8x1xf32> to vector<1x8x1xf32>
    %cst_14 = arith.constant dense<0.000000e+00> : vector<1xf32>
    %42 = vector.multi_reduction <add>, %41, %cst_14 [1, 2] : vector<1x8x1xf32> to vector<1xf32>
    %43 = vector.shape_cast %42 : vector<1xf32> to vector<1x1x1xf32>
    %44 = vector.extract %43[0, 0, 0] : f32 from vector<1x1x1xf32>
    %cst_15 = arith.constant 8.000000e+00 : f32
    %45 = arith.divf %44, %cst_15 : f32
    %c0_16 = arith.constant 0 : index
    %c0_17 = arith.constant 0 : index
    %46 = memref.load %arg3[%c0_16, %c0_17] : memref<1x1xf32, #tpu.memory_space<smem>>
    memref.store %45, %arg3[%c0_16, %c0_17] : memref<1x1xf32, #tpu.memory_space<smem>>
    return
  }
}

</mosaic_0001>

<llo_original>
// kernel: tpu_custom_call.1
$region0: #{tpu_custom_call.1}
  #allocation0 [shape = 'u32[]', space=smem, size = 0x4, offset = 0x4, fixed_abs, tag = 'smem constant byte address 0x4 - core index']
  #allocation1 [shape = 'u32[144,128]{1,0:T(1,128)}', space=vmem, size = 0x12000, scoped, tag = 'internal scratch']
  %s0 = inlined_call_operand.vmem [shape: f32[8,32], index: 0, kind: input, shape index: {}]
  %s1 = inlined_call_operand.vmem [shape: s32[8,1], index: 1, kind: input, shape index: {}]
  %s2 = inlined_call_operand.vmem [shape: s32[1,8], index: 2, kind: input, shape index: {}]
  %s3 = inlined_call_operand.hbm [shape: f32[1,1], index: 3, kind: output, shape index: {}]
  %s4 = sld [smem:[#allocation0]]
  $region22: #{tpu_custom_call.1} parent=0
    _
  %s6 = ssub.s32 1, %s4
  %s7 = scalar_select 0, %s6, %s4
  $region1: #{tpu_custom_call.1} parent=0
    #allocation2 [shape = 'u8[512]{0}', space=smem, size = 0x200, scoped, tag = 'output window, operand 0, single buffered']
    #allocation3 [shape = 's32[1]{0}', space=sflag, size = 0x4, scoped, tag = 'scoped memory for tpu_custom_call.1']
    %8 = vsyncpa [#allocation3], 0
    // Predicated region
    $region2: #{tpu_custom_call.1} parent=1 // pred_check
      _
    $region3: #{tpu_custom_call.1} parent=1 // pred_check_branch
      %10 = sbr.rel (0) target = $region5
    $region4: #{tpu_custom_call.1} parent=1 // pred_region
      _
    $region5: #{tpu_custom_call.1} parent=1 // pred_fallthru
      _
    // Predicated region
    $region6: #{tpu_custom_call.1} parent=1 // pred_check
      _
    $region7: #{tpu_custom_call.1} parent=1 // pred_check_branch
      %12 = sbr.rel (0) target = $region9
    $region8: #{tpu_custom_call.1} parent=1 // pred_region
      _
    $region9: #{tpu_custom_call.1} parent=1 // pred_fallthru
      _
    // Predicated region
    $region10: #{tpu_custom_call.1} parent=1 // pred_check
      _
    $region11: #{tpu_custom_call.1} parent=1 // pred_check_branch
      %14 = sbr.rel (0) target = $region13
    $region12: #{tpu_custom_call.1} parent=1 // pred_region
      _
    $region13: #{tpu_custom_call.1} parent=1 // pred_fallthru
      _
    %v15 = vld [vmem:[%s0] sm:$0xff]
    %v16 = vmul.f32 %v15, %v15
    %vm17 = vcmask 261120
    %v18 = vsel %vm17, %v16, 0.0
    %19 = vadd.xlane.f32.xlu0 %v18
    %v20 = vpop.xlane.xlu0 %19
    %v22 = vsel %vm17, %v15, 0
    %24 = vmatprep.subr.mxu0 0.0
    %25 = vmatpush1.xpose.msra.mxu0 0.0
    %26 = vmatprep.subr.mxu0 0.0
    %27 = vmatpush1.xpose.msra.mxu0 0.0
    %28 = vmatprep.subr.mxu0 0.0
    %29 = vmatpush1.xpose.msra.mxu0 0.0
    %30 = vmatprep.subr.mxu0 0.0
    %31 = vmatpush1.xpose.msra.mxu0 0.0
    %32 = vmatprep.subr.mxu0 0.0
    %33 = vmatpush1.xpose.msra.mxu0 0.0
    %34 = vmatprep.subr.mxu0 0.0
    %35 = vmatpush1.xpose.msra.mxu0 0.0
    %36 = vmatprep.subr.mxu0 0.0
    %37 = vmatpush1.xpose.msra.mxu0 0.0
    %38 = vmatprep.subr.mxu0 0.0
    %39 = vmatpush1.xpose.msra.mxu0 0.0
    %40 = vmatprep.subr.mxu0 0.0
    %41 = vmatpush1.xpose.msra.mxu0 0.0
    %42 = vmatprep.subr.mxu0 0.0
    %43 = vmatpush1.xpose.msra.mxu0 0.0
    %44 = vmatprep.subr.mxu0 0.0
    %45 = vmatpush1.xpose.msra.mxu0 0.0
    %46 = vmatprep.subr.mxu0 0.0
    %47 = vmatpush1.xpose.msra.mxu0 0.0
    %48 = vmatprep.subr.mxu0 0.0
    %49 = vmatpush1.xpose.msra.mxu0 0.0
    %50 = vmatprep.subr.mxu0 0.0
    %51 = vmatpush1.xpose.msra.mxu0 0.0
    %52 = vmatprep.subr.mxu0 0.0
    %53 = vmatpush1.xpose.msra.mxu0 0.0
    %54 = vmatprep.subr.mxu0 0.0
    %55 = vmatpush1.xpose.msra.mxu0 %v22
    %56 = vmatprep.subr.mxu0 0.0
    %57 = vmatpush2.xpose.msra.mxu0 0.0
    %58 = vmatprep.subr.mxu0 0.0
    %59 = vmatpush2.xpose.msra.mxu0 0.0
    %60 = vmatprep.subr.mxu0 0.0
    %61 = vmatpush2.xpose.msra.mxu0 0.0
    %62 = vmatprep.subr.mxu0 0.0
    %63 = vmatpush2.xpose.msra.mxu0 0.0
    %64 = vmatprep.subr.mxu0 0.0
    %65 = vmatpush2.xpose.msra.mxu0 0.0
    %66 = vmatprep.subr.mxu0 0.0
    %67 = vmatpush2.xpose.msra.mxu0 0.0
    %68 = vmatprep.subr.mxu0 0.0
    %69 = vmatpush2.xpose.msra.mxu0 0.0
    %70 = vmatprep.subr.mxu0 0.0
    %71 = vmatpush2.xpose.msra.mxu0 0.0
    %72 = vmatprep.subr.mxu0 0.0
    %73 = vmatpush2.xpose.msra.mxu0 0.0
    %74 = vmatprep.subr.mxu0 0.0
    %75 = vmatpush2.xpose.msra.mxu0 0.0
    %76 = vmatprep.subr.mxu0 0.0
    %77 = vmatpush2.xpose.msra.mxu0 0.0
    %78 = vmatprep.subr.mxu0 0.0
    %79 = vmatpush2.xpose.msra.mxu0 0.0
    %80 = vmatprep.subr.mxu0 0.0
    %81 = vmatpush2.xpose.msra.mxu0 0.0
    %82 = vmatprep.subr.mxu0 0.0
    %83 = vmatpush2.xpose.msra.mxu0 0.0
    %84 = vmatprep.subr.mxu0 0.0
    %85 = vmatpush2.xpose.msra.mxu0 0.0
    %86 = vmatprep.subr.mxu0 0.0
    %87 = vmatpush2.xpose.msra.mxu0 0.0
    %88 = vmatprep.mubr.f32.mxu0 0.0
    %89 = vmatmul.mubr.f32.gmra.mxu0 %v22
    %v90 = vpop.f32.mrf.mxu0
    %v91 = vadd.f32 0.0, %v90
    %v92 = vpop.f32.mrf.mxu0
    %93 = vdwg.mxu0
    %94 = vxpose.xlu0.b32.start [1/16] %v20, 128
    %95 = vxpose.xlu0.b32.cont [2/16] 0.0, 128
    %96 = vxpose.xlu0.b32.cont [3/16] 0.0, 128
    %97 = vxpose.xlu0.b32.cont [4/16] 0.0, 128
    %98 = vxpose.xlu0.b32.cont [5/16] 0.0, 128
    %99 = vxpose.xlu0.b32.cont [6/16] 0.0, 128
    %100 = vxpose.xlu0.b32.cont [7/16] 0.0, 128
    %101 = vxpose.xlu0.b32.cont [8/16] 0.0, 128
    %102 = vxpose.xlu0.b32.cont [9/16] 0.0, 128
    %103 = vxpose.xlu0.b32.cont [10/16] 0.0, 128
    %104 = vxpose.xlu0.b32.cont [11/16] 0.0, 128
    %105 = vxpose.xlu0.b32.cont [12/16] 0.0, 128
    %106 = vxpose.xlu0.b32.cont [13/16] 0.0, 128
    %107 = vxpose.xlu0.b32.cont [14/16] 0.0, 128
    %108 = vxpose.xlu0.b32.cont [15/16] 0.0, 128
    %109 = vxpose.xlu0.b32.end [16/16] 0.0, 128
    %v110 = vpop.trf.xlu0
    %v111 = vpop.trf.xlu0
    %v112 = vpop.trf.xlu0
    %v113 = vpop.trf.xlu0
    %v114 = vpop.trf.xlu0
    %v115 = vpop.trf.xlu0
    %v116 = vpop.trf.xlu0
    %v117 = vpop.trf.xlu0
    %v118 = vpop.trf.xlu0
    %v119 = vpop.trf.xlu0
    %v120 = vpop.trf.xlu0
    %v121 = vpop.trf.xlu0
    %v122 = vpop.trf.xlu0
    %v123 = vpop.trf.xlu0
    %v124 = vpop.trf.xlu0
    %v125 = vpop.trf.xlu0
    %v126 = vlaneseq
    %v127 = vshrl.u32 %v126, 7
    %v128 = vsub.s32 0, %v127
    %v129 = vrot.slane %v110, %v128
    %v130 = vadd.f32 %v20, %v129
    %v131 = vmul.f32 %v91, 2.0
    %v132 = vsub.f32 %v130, %v131
    %v133 = vmax.f32 %v132, 0.0
    %v134 = vld [vmem:[%s1] sm:$0xff]
    %v135 = vld [vmem:[%s2] sm:$0x1]
    %136 = vset.pattern.permute.xlu0 0
    %137 = vperm.xlu0 %136, %v134
    %v138 = vpop.permute.xlu0 %137
    %v139 = vlaneseq
    %v140 = vshrl.u32 %v139, 7
    %v141 = vsub.s32 0, %v140
    %v142 = vrot.slane %v135, %v141
    %vm143 = vcmp.eq.s32.totalorder %v138, %v142
    %v144 = vlaneseq
    %v145 = vshrl.u32 %v144, 7
    %v146 = vlaneseq
    %v147 = vand.u32 %v146, 127
    %vm148 = vcmp.ne.s32.totalorder %v145, %v147
    %vm149 = vmand %vm143, %vm148
    %v150 = vsel %vm149, %v133, 0.0
    %vm151 = vcmask 64512
    %v152 = vsel %vm151, %v150, -inf
    %153 = vmax.xlane.f32.xlu0 %v152
    %v154 = vpop.xlane.xlu0 %153
    %v155 = vsel %vm151, %v133, -inf
    %156 = vmax.xlane.f32.xlu0 %v155
    %v157 = vpop.xlane.xlu0 %156
    %v158 = vsel %vm143, %v157, %v133
    %v159 = vsel %vm151, %v158, inf
    %160 = vmin.xlane.f32.xlu0 %v159
    %v161 = vpop.xlane.xlu0 %160
    %v162 = vrsqrt.pop %v154
    %v163 = vmul.f32 %v154, %v162
    %vm164 = vcmp.eq.f32.partialorder %v154, inf
    %v165 = vsel %vm164, %v154, %v163
    %vm166 = vcmp.eq.f32.partialorder %v154, 0.0
    %v167 = vand.u32 %v154, 2147483648
    %v168 = vsel %vm166, %v167, %v165
    %v169 = vrsqrt.pop %v161
    %v170 = vmul.f32 %v161, %v169
    %vm171 = vcmp.eq.f32.partialorder %v161, inf
    %v172 = vsel %vm171, %v161, %v170
    %vm173 = vcmp.eq.f32.partialorder %v161, 0.0
    %v174 = vand.u32 %v161, 2147483648
    %v175 = vsel %vm173, %v174, %v172
    %v176 = vsub.f32 %v168, %v175
    %v177 = vadd.f32 %v176, 1.0
    %v178 = vmax.f32 %v177, 0.0
    %vm179 = vcmask 7168
    %v180 = vsel %vm179, %v178, 0.0
    %181 = vadd.xlane.f32.xlu0 %v180
    %v182 = vpop.xlane.xlu0 %181
    %v183 = vrot.slane %v182, 4
    %v184 = vadd.f32 %v182, %v183
    %v185 = vrot.slane %v184, 2
    %v186 = vadd.f32 %v184, %v185
    %v187 = vrot.slane %v186, 1
    %v188 = vadd.f32 %v186, %v187
    %s189 = vtos %v188
    %v190 = vrcp.pop 8.0
    %s191 = vtos %v190
    %s192 = smul.f32 %s189, %s191
    %s193 = scalar_lea.smem [#allocation2], 0
    %194 = sst [smem:[%s193]] %s192
    // Predicated region
    $region14: #{tpu_custom_call.1} parent=1 // pred_check
      _
    $region15: #{tpu_custom_call.1} parent=1 // pred_check_branch
      %196 = sbr.rel (0) target = $region17
    $region16: #{tpu_custom_call.1} parent=1 // pred_region
      %s198 = ssub.s32 16, 16
      %199 = vsyncadd [#allocation3], %s198
      %202 = dma.smem_to_hbm [#allocation2], 16, %s3, [#allocation3]
    $region17: #{tpu_custom_call.1} parent=1 // pred_fallthru
      _
    // Predicated region
    $region18: #{tpu_custom_call.1} parent=1 // pred_check
      _
    $region19: #{tpu_custom_call.1} parent=1 // pred_check_branch
      %204 = sbr.rel (0) target = $region21
    $region20: #{tpu_custom_call.1} parent=1 // pred_region
      %205 = dma.done [#allocation3], 16
    $region21: #{tpu_custom_call.1} parent=1 // pred_fallthru
      _
    %206 = sfence
    %207 = vsyncpa [#allocation3], 1

</llo_original>
